<compile_context>
chip_gen: v5e
topology: v5e:2x2
jax: 0.10.0
libtpu: 0.0.40
codegen_flags: <defaults>
</compile_context>

<pallas_src>
import math

import jax
import jax.numpy as jnp
from jax.experimental import pallas as pl
from jax.experimental.pallas import tpu as pltpu


# ---------------------------------------------------------------------------
# Kernels
# ---------------------------------------------------------------------------

def _linear_pooler_kernel(x_ref, w_ref, b_ref, o_ref):
    # x_ref: (B, D_in) CLS rows; w_ref: (D_in, tn) bf16; b_ref: (1, tn) f32.
    # The MXU consumes bf16 operands natively with f32 accumulation, so there
    # is no f32 upcast of either operand.
    x = x_ref[...].astype(w_ref.dtype)
    acc = jnp.dot(x, w_ref[...], preferred_element_type=jnp.float32)
    o_ref[...] = (acc + b_ref[...]).astype(o_ref.dtype)


def _linear_pooler_pair_kernel(xq_ref, xp_ref, w_ref, b_ref, oq_ref, op_ref):
    # Tied weights: one weight DMA and one MXU stream for both q and p.
    w = w_ref[...]
    bq = xq_ref.shape[0]
    x = jnp.concatenate([xq_ref[...].astype(w.dtype),
                         xp_ref[...].astype(w.dtype)], axis=0)        # (2B, D_in)
    acc = jnp.dot(x, w, preferred_element_type=jnp.float32) + b_ref[...]
    oq_ref[...] = acc[:bq].astype(oq_ref.dtype)
    op_ref[...] = acc[bq:].astype(op_ref.dtype)


# ---------------------------------------------------------------------------
# Generation / VMEM-aware tiling helpers
# ---------------------------------------------------------------------------

def _num_tensorcores():
    """Best-effort count of TensorCores sharing this kernel's grid (v7x: 2)."""
    try:
        info = pltpu.get_tpu_info()
        for attr in ("num_cores", "core_count", "num_tensorcores"):
            n = getattr(info, attr, None)
            if isinstance(n, int) and n >= 1:
                return n
    except Exception:
        pass
    try:
        kind = jax.devices()[0].device_kind.lower()
        if "v7" in kind:
            return 2
    except Exception:
        pass
    return 1


def _vmem_budget_bytes():
    """Conservative per-kernel VMEM budget (half physical, >= 16 MiB)."""
    try:
        cap = int(pltpu.get_tpu_info().vmem_capacity_bytes)
    except Exception:
        cap = 64 << 20   # v7x per-TC physical; safe lower bound everywhere else
    return max(cap // 2, 16 << 20)


def _pick_tn(d_out, d_in, batch, n_inputs, w_itemsize, x_itemsize,
             out_itemsize, vmem_budget, num_cores):
    """Largest lane-aligned (multiple-of-128) column tile of D_out that fits VMEM.

    Single-TC chips (v5e/v6e): prefer one grid step (extra steps only cost
    ~0.35 us each with no overlap benefit). v7x (2 TCs): cap at D_out//2 so
    the 'parallel' axis shards the weight DMA across both cores.
    """
    if d_out % 128 != 0:
        return d_out                                  # whole-dim block
    cands = [t for t in range(128, d_out + 1, 128) if d_out % t == 0]

    def fits(tn):
        w_bytes = 2 * d_in * tn * w_itemsize          # double-buffered weight tile
        x_bytes = n_inputs * batch * d_in * x_itemsize   # single-buffered CLS rows
        o_bytes = n_inputs * 2 * batch * tn * out_itemsize
        return w_bytes + x_bytes + o_bytes + 4 * tn <= vmem_budget

    fitting = [t for t in cands if fits(t)]
    tn = max(fitting) if fitting else cands[0]
    if num_cores >= 2 and tn == d_out and d_out % 256 == 0:
        tn = d_out // 2                               # >=2 grid steps on v7x
    return tn


def _resident_spec(block_shape, index_map):
    """BlockSpec for a grid-invariant operand; single-buffered when supported."""
    try:
        return pl.BlockSpec(block_shape, index_map, pipeline_mode=pl.Buffered(1))
    except TypeError:
        return pl.BlockSpec(block_shape, index_map)


def _prep_cls(x3d):
    """Return a 2-D array whose first D_in columns are the CLS rows x3d[:, 0]."""
    B, S, D = x3d.shape
    if S == 1 or D % 128 == 0:
        # Free row-major reshape (no data movement); columns [0, D) of each row
        # are exactly the CLS token, so the slice is pure BlockSpec indexing.
        return x3d.reshape(B, S * D)
    # Lane-unfriendly D: fall back to materializing the slice in the wrapper.
    # TODO(synk): replace with a manual strided DMA (memory_space=pl.ANY) to
    # avoid the extra XLA slice op + HBM round trip when D % 128 != 0.
    return x3d[:, 0, :]


# ---------------------------------------------------------------------------
# Wrappers
# ---------------------------------------------------------------------------

@jax.jit
def linear_pooler_forward(x3d, weight, bias):
    """x3d: [B, S, D_in]  weight: [D_in, D_out] (bf16)  bias: [D_out] -> [B, D_out]."""
    B = x3d.shape[0]
    D_in, D_out = weight.shape
    x2d = _prep_cls(x3d)
    vmem_budget = _vmem_budget_bytes()
    tn = _pick_tn(D_out, D_in, B, 1, weight.dtype.itemsize,
                  x2d.dtype.itemsize, x3d.dtype.itemsize,
                  vmem_budget, _num_tensorcores())
    grid = (D_out // tn,)
    bias2d = bias.reshape(1, D_out).astype(jnp.float32)

    bytes_accessed = (weight.size * weight.dtype.itemsize
                      + B * D_in * x3d.dtype.itemsize
                      + B * D_out * x3d.dtype.itemsize
                      + D_out * 4)

    return pl.pallas_call(
        _linear_pooler_kernel,
        out_shape=jax.ShapeDtypeStruct((B, D_out), x3d.dtype),
        grid=grid,
        in_specs=[
            _resident_spec((B, D_in), lambda j: (0, 0)),   # CLS rows (grid-invariant)
            pl.BlockSpec((D_in, tn), lambda j: (0, j)),    # weight column tile
            pl.BlockSpec((1, tn), lambda j: (0, j)),       # bias tile
        ],
        out_specs=pl.BlockSpec((B, tn), lambda j: (0, j)),
        compiler_params=pltpu.CompilerParams(
            dimension_semantics=("parallel",),
            vmem_limit_bytes=vmem_budget),
        cost_estimate=pl.CostEstimate(flops=2 * B * D_in * D_out,
                                      transcendentals=0,
                                      bytes_accessed=bytes_accessed),
    )(x2d, weight, bias2d)


@jax.jit
def linear_pooler_forward_pair(q3d, p3d, weight, bias):
    """Tied-weight path: one pallas_call (one weight DMA) for both q and p."""
    B = q3d.shape[0]
    D_in, D_out = weight.shape
    xq = _prep_cls(q3d)
    xp = _prep_cls(p3d)
    vmem_budget = _vmem_budget_bytes()
    tn = _pick_tn(D_out, D_in, B, 2, weight.dtype.itemsize,
                  xq.dtype.itemsize, q3d.dtype.itemsize,
                  vmem_budget, _num_tensorcores())
    grid = (D_out // tn,)
    bias2d = bias.reshape(1, D_out).astype(jnp.float32)

    bytes_accessed = (weight.size * weight.dtype.itemsize
                      + 2 * B * D_in * q3d.dtype.itemsize
                      + 2 * B * D_out * q3d.dtype.itemsize
                      + D_out * 4)

    return pl.pallas_call(
        _linear_pooler_pair_kernel,
        out_shape=(jax.ShapeDtypeStruct((B, D_out), q3d.dtype),
                   jax.ShapeDtypeStruct((B, D_out), p3d.dtype)),
        grid=grid,
        in_specs=[
            _resident_spec((B, D_in), lambda j: (0, 0)),
            _resident_spec((B, D_in), lambda j: (0, 0)),
            pl.BlockSpec((D_in, tn), lambda j: (0, j)),
            pl.BlockSpec((1, tn), lambda j: (0, j)),
        ],
        out_specs=(pl.BlockSpec((B, tn), lambda j: (0, j)),
                   pl.BlockSpec((B, tn), lambda j: (0, j))),
        compiler_params=pltpu.CompilerParams(
            dimension_semantics=("parallel",),
            vmem_limit_bytes=vmem_budget),
        cost_estimate=pl.CostEstimate(flops=4 * B * D_in * D_out,
                                      transcendentals=0,
                                      bytes_accessed=bytes_accessed),
    )(xq, xp, weight, bias2d)


# ---------------------------------------------------------------------------
# Module mirror
# ---------------------------------------------------------------------------

class LinearPoolerPallas:
    """JAX/Pallas mirror of the PyTorch LinearPooler (tied by default).

    Weight layout is [input_dim, output_dim] (transpose of nn.Linear) and is
    stored in bf16 (the op is weight-DMA bound); bias stays f32.
    """

    # TODO(synk): load()/save_pooler() checkpoint file I/O from the PyTorch
    # module is host-side (torch.load/save/json), not a kernel; omitted here.
    # TODO(synk): for v7x (tn = D_out//2) a host-side pre-tiled weight layout
    # (D_out//tn, D_in, tn) would give fully contiguous per-tile DMAs.

    def __init__(self, input_dim=768, output_dim=768, tied=True, key=None,
                 weight_dtype=jnp.bfloat16):
        if key is None:
            key = jax.random.PRNGKey(0)
        kq_w, kq_b, kp_w, kp_b = jax.random.split(key, 4)
        bound = 1.0 / math.sqrt(input_dim)
        self.tied = tied
        self.wq = jax.random.uniform(kq_w, (input_dim, output_dim),
                                     jnp.float32, -bound, bound).astype(weight_dtype)
        self.bq = jax.random.uniform(kq_b, (output_dim,),
                                     jnp.float32, -bound, bound)
        if tied:
            self.wp, self.bp = self.wq, self.bq
        else:
            self.wp = jax.random.uniform(kp_w, (input_dim, output_dim),
                                         jnp.float32, -bound, bound).astype(weight_dtype)
            self.bp = jax.random.uniform(kp_b, (output_dim,),
                                         jnp.float32, -bound, bound)

    def __call__(self, q=None, p=None):
        if q is not None:
            return linear_pooler_forward(q, self.wq, self.bq)
        elif p is not None:
            return linear_pooler_forward(p, self.wp, self.bp)
        else:
            raise ValueError("either q or p must be provided")

    def forward_pair(self, q, p):
        """Optional fast path: pool q and p together (one weight DMA if tied)."""
        if self.tied:
            return linear_pooler_forward_pair(q, p, self.wq, self.bq)
        return (linear_pooler_forward(q, self.wq, self.bq),
                linear_pooler_forward(p, self.wp, self.bp))


# ---------------------------------------------------------------------------
# Self-test
# ---------------------------------------------------------------------------

if __name__ == "__main__":
    key = jax.random.PRNGKey(0)
    k_q, k_p, k_params = jax.random.split(key, 3)

    # Small shapes; hidden = 128 keeps output stores lane-dense (the module
    # default 768 is also a multiple of 128).
    batch, seq, hidden = 2, 8, 128
    q = jax.random.normal(k_q, (batch, seq, hidden), jnp.float32)
    p = jax.random.normal(k_p, (batch, seq, hidden), jnp.float32)

    pooler = LinearPoolerPallas(input_dim=hidden, output_dim=hidden, tied=True,
                                key=k_params)

    out_q = pooler(q=q)
    out_p = pooler(p=p)
    out_q2, out_p2 = pooler.forward_pair(q, p)
    jax.block_until_ready((out_q, out_p, out_q2, out_p2))

    # Plain-JAX reference with the same math path as the kernel: bf16 operands,
    # f32 accumulation, f32 bias add.
    def ref(x3d, w, b):
        x = x3d[:, 0].astype(w.dtype)
        return (jnp.dot(x, w, preferred_element_type=jnp.float32)
                + b.astype(jnp.float32)).astype(x3d.dtype)

    ref_q = ref(q, pooler.wq, pooler.bq)
    ref_p = ref(p, pooler.wp, pooler.bp)

    assert out_q.shape == (batch, hidden) and out_q.dtype == q.dtype
    assert out_p.shape == (batch, hidden)
    assert jnp.allclose(out_q, ref_q, atol=1e-2, rtol=1e-2)
    assert jnp.allclose(out_p, ref_p, atol=1e-2, rtol=1e-2)
    assert jnp.allclose(out_q2, ref_q, atol=1e-2, rtol=1e-2)
    assert jnp.allclose(out_p2, ref_p, atol=1e-2, rtol=1e-2)

    print("KERNEL_OK")
</pallas_src>

<mosaic_0001>
module attributes {stable_mosaic.version = 11 : i64} {
  func.func @_linear_pooler_kernel(%arg0: i32, %arg1: memref<2x128xf32, #tpu.memory_space<vmem>>, %arg2: memref<128x128xbf16, #tpu.memory_space<vmem>>, %arg3: memref<1x128xf32, #tpu.memory_space<vmem>>, %arg4: memref<2x128xf32, #tpu.memory_space<vmem>>) attributes {dimension_semantics = [#tpu.dimension_semantics<parallel>], iteration_bounds = array<i64: 1>, scalar_prefetch = 0 : i64, scratch_operands = 0 : i64, tpu.core_type = #tpu.core_type<tc>, window_params = [{pipeline_mode = #tpu.pipeline_mode<synchronous>, transform_indices = @transform_0, window_bounds = array<i64: 2, 128>}, {transform_indices = @transform_1, window_bounds = array<i64: 128, 128>}, {transform_indices = @transform_2, window_bounds = array<i64: 1, 128>}, {transform_indices = @transform_3, window_bounds = array<i64: 2, 128>}]} {
    %c0 = arith.constant 0 : index
    %c0_0 = arith.constant 0 : index
    %0 = vector.load %arg1[%c0, %c0_0] : memref<2x128xf32, #tpu.memory_space<vmem>>, vector<2x128xf32>
    %1 = arith.truncf %0 : vector<2x128xf32> to vector<2x128xbf16>
    %c0_1 = arith.constant 0 : index
    %c0_2 = arith.constant 0 : index
    %2 = vector.load %arg2[%c0_1, %c0_2] : memref<128x128xbf16, #tpu.memory_space<vmem>>, vector<128x128xbf16>
    %cst = arith.constant dense<0.000000e+00> : vector<2x128xf32>
    %3 = tpu.matmul %1, %2, %cst {dimension_numbers = #tpu.dot_dimension_numbers<[1], [0], [0], [1], [0, 0, 1, 1], [], []>} : vector<2x128xbf16>, vector<128x128xbf16>, vector<2x128xf32> -> vector<2x128xf32>
    %c0_3 = arith.constant 0 : index
    %c0_4 = arith.constant 0 : index
    %4 = vector.load %arg3[%c0_3, %c0_4] : memref<1x128xf32, #tpu.memory_space<vmem>>, vector<1x128xf32>
    %5 = vector.broadcast %4 : vector<1x128xf32> to vector<2x128xf32>
    %6 = arith.addf %3, %5 : vector<2x128xf32>
    %c0_5 = arith.constant 0 : index
    %c0_6 = arith.constant 0 : index
    %7 = vector.load %arg4[%c0_5, %c0_6] : memref<2x128xf32, #tpu.memory_space<vmem>>, vector<2x128xf32>
    tpu.vector_store %arg4[%c0_5, %c0_6], %6 {strides = array<i32>} : memref<2x128xf32, #tpu.memory_space<vmem>>, vector<2x128xf32>,
    return
  }
  func.func @transform_0(%arg0: i32) -> (i32, i32) {
    %c0_i32 = arith.constant 0 : i32
    %c0_i32_0 = arith.constant 0 : i32
    %c0_i32_1 = arith.constant 0 : i32
    return %c0_i32, %c0_i32_0 : i32, i32
  }
  func.func @transform_1(%arg0: i32) -> (i32, i32) {
    %c0_i32 = arith.constant 0 : i32
    %c0_i32_0 = arith.constant 0 : i32
    return %c0_i32, %arg0 : i32, i32
  }
  func.func @transform_2(%arg0: i32) -> (i32, i32) {
    %c0_i32 = arith.constant 0 : i32
    %c0_i32_0 = arith.constant 0 : i32
    return %c0_i32, %arg0 : i32, i32
  }
  func.func @transform_3(%arg0: i32) -> (i32, i32) {
    %c0_i32 = arith.constant 0 : i32
    %c0_i32_0 = arith.constant 0 : i32
    return %c0_i32, %arg0 : i32, i32
  }
}

</mosaic_0001>

<llo_original>
// kernel: linear_pooler_forward.1
$region0: #{linear_pooler_forward.1}
  #allocation0 [shape = 'u32[]', space=smem, size = 0x4, offset = 0x4, fixed_abs, tag = 'smem constant byte address 0x4 - core index']
  #allocation1 [shape = 'u32[72,128]{1,0:T(1,128)}', space=vmem, size = 0x9000, scoped, tag = 'internal scratch']
  %s0 = inlined_call_operand.vmem [shape: f32[2,1024], index: 0, kind: input, shape index: {}]
  %s1 = inlined_call_operand.hbm [shape: bf16[128,128], index: 1, kind: input, shape index: {}]
  %s2 = inlined_call_operand.vmem [shape: f32[1,128], index: 2, kind: input, shape index: {}]
  %s3 = inlined_call_operand.hbm [shape: f32[2,128], index: 3, kind: output, shape index: {}]
  %s4 = sld [smem:[#allocation0]]
  $region26: #{linear_pooler_forward.1} parent=0
    _
  %s6 = ssub.s32 1, %s4
  %s7 = scalar_select 0, %s6, %s4
  $region1: #{linear_pooler_forward.1} parent=0
    #allocation2 [shape = 'u8[32768]{0}', space=vmem, size = 0x8000, scoped, tag = 'input window, operand 1, single buffered']
    #allocation3 [shape = 's32[1]{0}', space=sflag, size = 0x4, scoped, tag = 'scoped memory for linear_pooler_forward.1']
    #allocation4 [shape = 's32[1]{0}', space=sflag, size = 0x4, scoped, tag = 'scoped memory for linear_pooler_forward.1']
    #allocation5 [shape = 'u8[1024]{0}', space=vmem, size = 0x400, scoped, tag = 'output window, operand 0, single buffered']
    %8 = vsyncpa [#allocation3], 0
    %9 = vsyncpa [#allocation4], 0
    // Predicated region
    $region2: #{linear_pooler_forward.1} parent=1 // pred_check
      _
    $region3: #{linear_pooler_forward.1} parent=1 // pred_check_branch
      %11 = sbr.rel (0) target = $region5
    $region4: #{linear_pooler_forward.1} parent=1 // pred_region
      _
    $region5: #{linear_pooler_forward.1} parent=1 // pred_fallthru
      _
    // Predicated region
    $region6: #{linear_pooler_forward.1} parent=1 // pred_check
      _
    $region7: #{linear_pooler_forward.1} parent=1 // pred_check_branch
      %13 = sbr.rel (0) target = $region9
    $region8: #{linear_pooler_forward.1} parent=1 // pred_region
      %15 = vsyncadd [#allocation3], 0
      %s16 = sshll.u32 %s1, 4
      %s17 = int_to_ptr.hbm [resolvable:$true] %s16
      %s18 = sshll.u32 [#allocation2], 4
      %s19 = int_to_ptr.vmem [resolvable:$true] %s18
      %24 = dma.hbm_to_vmem [thread:$0]  %s17, 1024, %s19, [#allocation3], 64, 64, 4
    $region9: #{linear_pooler_forward.1} parent=1 // pred_fallthru
      _
    // Predicated region
    $region10: #{linear_pooler_forward.1} parent=1 // pred_check
      _
    $region11: #{linear_pooler_forward.1} parent=1 // pred_check_branch
      %26 = sbr.rel (0) target = $region13
    $region12: #{linear_pooler_forward.1} parent=1 // pred_region
      _
    $region13: #{linear_pooler_forward.1} parent=1 // pred_fallthru
      _
    // Predicated region
    $region14: #{linear_pooler_forward.1} parent=1 // pred_check
      _
    $region15: #{linear_pooler_forward.1} parent=1 // pred_check_branch
      %28 = sbr.rel (0) target = $region17
    $region16: #{linear_pooler_forward.1} parent=1 // pred_region
      %30 = dma.done [#allocation3], 1024
    $region17: #{linear_pooler_forward.1} parent=1 // pred_fallthru
      _
    %v31 = vld [vmem:[%s0] sm:$0x3]
    %v32 = vpack.c.bf16 %v31, %v31
    %v33 = vld [vmem:[#allocation2] sm:$0xf]
    %v34 = vld [vmem:[#allocation2 + $0x4] sm:$0xf]
    %v35 = vld [vmem:[#allocation2 + $0x8] sm:$0xf]
    %v36 = vld [vmem:[#allocation2 + $0xc] sm:$0xf]
    %v37 = vld [vmem:[#allocation2 + $0x10] sm:$0xf]
    %v38 = vld [vmem:[#allocation2 + $0x14] sm:$0xf]
    %v39 = vld [vmem:[#allocation2 + $0x18] sm:$0xf]
    %v40 = vld [vmem:[#allocation2 + $0x1c] sm:$0xf]
    %v41 = vld [vmem:[#allocation2 + $0x20] sm:$0xf]
    %v42 = vld [vmem:[#allocation2 + $0x24] sm:$0xf]
    %v43 = vld [vmem:[#allocation2 + $0x28] sm:$0xf]
    %v44 = vld [vmem:[#allocation2 + $0x2c] sm:$0xf]
    %v45 = vld [vmem:[#allocation2 + $0x30] sm:$0xf]
    %v46 = vld [vmem:[#allocation2 + $0x34] sm:$0xf]
    %v47 = vld [vmem:[#allocation2 + $0x38] sm:$0xf]
    %v48 = vld [vmem:[#allocation2 + $0x3c] sm:$0xf]
    %v49 = vld [vmem:[%s2] sm:$0x1]
    %v51 = vperm.slane %v49, 0
    %v69 = vunpack.c.l.b16 %v33
    %v70 = vunpack.c.l.b16 %v34
    %v71 = vunpack.c.l.b16 %v35
    %v72 = vunpack.c.l.b16 %v36
    %v73 = vunpack.c.l.b16 %v37
    %v74 = vunpack.c.l.b16 %v38
    %v75 = vunpack.c.l.b16 %v39
    %v76 = vunpack.c.l.b16 %v40
    %v77 = vunpack.c.l.b16 %v41
    %v78 = vunpack.c.l.b16 %v42
    %v79 = vunpack.c.l.b16 %v43
    %v80 = vunpack.c.l.b16 %v44
    %v81 = vunpack.c.l.b16 %v45
    %v82 = vunpack.c.l.b16 %v46
    %v83 = vunpack.c.l.b16 %v47
    %v84 = vunpack.c.l.b16 %v48
    %v85 = vpack.c.b16 %v70, %v69
    %v86 = vpack.c.b16 %v72, %v71
    %v87 = vpack.c.b16 %v74, %v73
    %v88 = vpack.c.b16 %v76, %v75
    %v89 = vpack.c.b16 %v78, %v77
    %v90 = vpack.c.b16 %v80, %v79
    %v91 = vpack.c.b16 %v82, %v81
    %v92 = vpack.c.b16 %v84, %v83
    %101 = vmatpush.bf16.msra.mxu0 %v92
    %102 = vmatpush.bf16.msra.mxu0 %v91
    %103 = vmatpush.bf16.msra.mxu0 %v90
    %104 = vmatpush.bf16.msra.mxu0 %v89
    %105 = vmatpush.bf16.msra.mxu0 %v88
    %106 = vmatpush.bf16.msra.mxu0 %v87
    %107 = vmatpush.bf16.msra.mxu0 %v86
    %108 = vmatpush.bf16.msra.mxu0 %v85
    %109 = vmatmul.bf16.gmra.mxu0 %v32
    %v110 = vpop.f32.mrf.mxu0
    %v111 = vadd.f32 %v51, %v110
    %v112 = vpop.f32.mrf.mxu0
    %113 = vdwg.mxu0
    %114 = vst [vmem:[#allocation5] sm:$0x3] %v111
    // Predicated region
    $region18: #{linear_pooler_forward.1} parent=1 // pred_check
      _
    $region19: #{linear_pooler_forward.1} parent=1 // pred_check_branch
      %116 = sbr.rel (0) target = $region21
    $region20: #{linear_pooler_forward.1} parent=1 // pred_region
      %118 = vsyncadd [#allocation4], 0
      %s120 = sshll.u32 [#allocation5], 4
      %s121 = int_to_ptr.vmem [resolvable:$true] %s120
      %s122 = sshll.u32 %s3, 4
      %s123 = int_to_ptr.hbm [resolvable:$true] %s122
      %125 = dma.vmem_to_hbm [thread:$0]  %s121, 32, %s123, [#allocation4]
    $region21: #{linear_pooler_forward.1} parent=1 // pred_fallthru
      _
    // Predicated region
    $region22: #{linear_pooler_forward.1} parent=1 // pred_check
      _
    $region23: #{linear_pooler_forward.1} parent=1 // pred_check_branch
      %127 = sbr.rel (0) target = $region25
    $region24: #{linear_pooler_forward.1} parent=1 // pred_region
      %129 = dma.done [#allocation4], 32
    $region25: #{linear_pooler_forward.1} parent=1 // pred_fallthru
      _
    %130 = vsyncpa [#allocation3], 1
    %131 = vsyncpa [#allocation4], 1

</llo_original>
